<compile_context>
chip_gen: v5e
topology: v5e:2x2
jax: 0.10.0
libtpu: 0.0.40
codegen_flags: <defaults>
</compile_context>

<pallas_src>
import jax
import jax.numpy as jnp
from jax import lax
from jax.experimental import pallas as pl
from jax.experimental.pallas import tpu as pltpu

d_model = 768
max_len = 30
n_segments = 2
vocab_size = 4          # {'[PAD]', '[CLS]', '[SEP]', '[MASK]'}
LN_EPS = 1e-5           # nn.LayerNorm default eps


def _embedding_kernel(ids_ref, table_ref, gamma_ref, beta_ref, o_ref):
    """One (TN, d_model) row tile: multi-hot gather-sum + fused LayerNorm."""
    packed = ids_ref[...]                       # (TN, 1) int32: tok | seg<<8 | pos<<16
    tok_id = packed & 0xFF                      # combined-table row of the token emb
    seg_id = (packed >> 8) & 0xFF               # combined-table row of the segment emb
    pos_id = packed >> 16                       # combined-table row of the position emb

    t = table_ref.shape[0]                      # T_pad (=128), static
    iota = lax.broadcasted_iota(jnp.int32, (1, t), 1)          # (1, T_pad)

    # The three id ranges are disjoint by construction, so OR-ing the compares
    # is an exact multi-hot; one bool->f32 convert total.
    hits = (tok_id == iota) | (seg_id == iota) | (pos_id == iota)   # (TN, T_pad) bool
    onehot = hits.astype(jnp.float32)

    # tok_emb + pos_emb + seg_emb for the whole tile in one aligned K=128 matmul.
    emb = jnp.dot(onehot, table_ref[...], preferred_element_type=jnp.float32)  # (TN, D)

    # Fused single-pass LayerNorm (stats in f32).
    inv_d = 1.0 / float(emb.shape[-1])
    s1 = jnp.sum(emb, axis=-1, keepdims=True)
    s2 = jnp.sum(emb * emb, axis=-1, keepdims=True)
    mean = s1 * inv_d
    var = jnp.maximum(s2 * inv_d - mean * mean, 0.0)
    inv = lax.rsqrt(var + LN_EPS)                                 # EUP slot
    o_ref[...] = ((emb - mean) * inv * gamma_ref[...] + beta_ref[...]).astype(o_ref.dtype)


def bert_embedding(x, seg, tok_table, pos_table, seg_table, gamma, beta,
                   *, tile_rows=512, out_dtype=None):
    """x, seg: [B, S] int ids. Returns LayerNorm(tok[x] + pos[arange] + seg[seg]): [B, S, D]."""
    B, S = x.shape
    V, D = tok_table.shape
    P = pos_table.shape[0]
    G = seg_table.shape[0]
    T = V + P + G
    out_dtype = out_dtype or tok_table.dtype
    assert T <= 256, "packed-id fields assume the combined table has < 256 rows"

    # Combined embedding table, padded to a full 128-lane contraction dim.
    T_pad = ((T + 127) // 128) * 128
    table = jnp.concatenate([tok_table, pos_table, seg_table], axis=0)     # (T, D)
    if T_pad != T:
        table = jnp.pad(table, ((0, T_pad - T), (0, 0)))                   # (T_pad, D)

    # Pack the three combined-table row indices of every (b, s) row into one
    # int32: tok in bits 0..7, seg(+V+P) in bits 8..15, pos(+V) in bits 16..31.
    pos = jnp.broadcast_to(jnp.arange(S, dtype=jnp.int32)[None, :], (B, S))
    tok_id = x.reshape(-1).astype(jnp.int32)
    seg_id = seg.reshape(-1).astype(jnp.int32) + (V + P)
    pos_id = pos.reshape(-1) + V
    packed = (tok_id | (seg_id << 8) | (pos_id << 16)).reshape(-1, 1)      # (N, 1)

    N = B * S
    tile = max(8, ((tile_rows + 7) // 8) * 8)      # row tile, multiple of 8 sublanes
    if tile >= N:
        # Single block covering everything: full-extent dims are always legal.
        TN, grid, ids = N, 1, packed
    else:
        TN, grid = tile, pl.cdiv(N, TN := tile)
        pad_rows = grid * TN - N
        # Keep the id blocks evenly divided (padded rows hit valid table row 0;
        # their outputs are masked off by the ragged last output block).
        ids = jnp.pad(packed, ((0, pad_rows), (0, 0))) if pad_rows else packed

    # NOTE: at production N the grid has many parallel steps (megacore on v7x);
    # working set at TN=512 (~6 MiB) fits every generation's default scoped
    # VMEM, so no vmem_limit_bytes override is needed.  Pass out_dtype=bf16 to
    # halve the dominant HBM output stream if downstream accepts it.
    out = pl.pallas_call(
        _embedding_kernel,
        out_shape=jax.ShapeDtypeStruct((N, D), out_dtype),
        grid_spec=pltpu.PrefetchScalarGridSpec(
            num_scalar_prefetch=0,
            grid=(grid,),
            in_specs=[
                pl.BlockSpec((TN, 1), lambda i: (i, 0)),       # packed per-tile ids
                pl.BlockSpec((T_pad, D), lambda i: (0, 0)),    # VMEM-resident table
                pl.BlockSpec((1, D), lambda i: (0, 0)),        # LayerNorm gamma
                pl.BlockSpec((1, D), lambda i: (0, 0)),        # LayerNorm beta
            ],
            out_specs=pl.BlockSpec((TN, D), lambda i: (i, 0)), # lane-dense store, ragged edge masked
        ),
        compiler_params=pltpu.CompilerParams(
            dimension_semantics=("parallel",),
        ),
    )(ids, table, gamma.reshape(1, D), beta.reshape(1, D))

    return out.reshape(B, S, D)


def _reference(x, seg, tok_table, pos_table, seg_table, gamma, beta):
    pos = jnp.arange(x.shape[1])
    emb = tok_table[x] + pos_table[pos][None, :, :] + seg_table[seg]
    mean = emb.mean(axis=-1, keepdims=True)
    var = jnp.mean((emb - mean) ** 2, axis=-1, keepdims=True)
    return (emb - mean) / jnp.sqrt(var + LN_EPS) * gamma + beta


if __name__ == "__main__":
    B, S = 2, max_len   # seq_len = 30 (<= max_len), as the BERT pipeline implies

    key = jax.random.PRNGKey(0)
    k_x, k_seg, k_tok, k_pos, k_segt, k_g, k_b = jax.random.split(key, 7)

    x = jax.random.randint(k_x, (B, S), 0, vocab_size, dtype=jnp.int32)
    seg = jax.random.randint(k_seg, (B, S), 0, n_segments, dtype=jnp.int32)

    tok_table = jax.random.normal(k_tok, (vocab_size, d_model), dtype=jnp.float32)
    pos_table = jax.random.normal(k_pos, (max_len, d_model), dtype=jnp.float32)
    seg_table = jax.random.normal(k_segt, (n_segments, d_model), dtype=jnp.float32)
    gamma = 1.0 + 0.1 * jax.random.normal(k_g, (d_model,), dtype=jnp.float32)
    beta = 0.1 * jax.random.normal(k_b, (d_model,), dtype=jnp.float32)

    ref = _reference(x, seg, tok_table, pos_table, seg_table, gamma, beta)

    # Default (single-block) path.
    out = bert_embedding(x, seg, tok_table, pos_table, seg_table, gamma, beta)
    out = jax.block_until_ready(out)
    assert out.shape == (B, S, d_model)
    assert jnp.allclose(out, ref, atol=1e-4, rtol=1e-4), "mismatch (default tile)"

    # Multi-block path with a ragged (masked) last output block.
    out2 = bert_embedding(x, seg, tok_table, pos_table, seg_table, gamma, beta,
                          tile_rows=32)
    out2 = jax.block_until_ready(out2)
    assert jnp.allclose(out2, ref, atol=1e-4, rtol=1e-4), "mismatch (tiled path)"

    print("KERNEL_OK")
</pallas_src>

<mosaic_0001>
module attributes {stable_mosaic.version = 11 : i64} {
  func.func @_embedding_kernel(%arg0: i32, %arg1: memref<60x1xi32, #tpu.memory_space<vmem>>, %arg2: memref<128x768xf32, #tpu.memory_space<vmem>>, %arg3: memref<1x768xf32, #tpu.memory_space<vmem>>, %arg4: memref<1x768xf32, #tpu.memory_space<vmem>>, %arg5: memref<60x768xf32, #tpu.memory_space<vmem>>) attributes {dimension_semantics = [#tpu.dimension_semantics<parallel>], iteration_bounds = array<i64: 1>, scalar_prefetch = 0 : i64, scratch_operands = 0 : i64, tpu.core_type = #tpu.core_type<tc>, window_params = [{transform_indices = @transform_0, window_bounds = array<i64: 60, 1>}, {pipeline_mode = #tpu.pipeline_mode<synchronous>, transform_indices = @transform_1, window_bounds = array<i64: 128, 768>}, {pipeline_mode = #tpu.pipeline_mode<synchronous>, transform_indices = @transform_2, window_bounds = array<i64: 1, 768>}, {pipeline_mode = #tpu.pipeline_mode<synchronous>, transform_indices = @transform_3, window_bounds = array<i64: 1, 768>}, {transform_indices = @transform_4, window_bounds = array<i64: 60, 768>}]} {
    %c0 = arith.constant 0 : index
    %c0_0 = arith.constant 0 : index
    %0 = vector.load %arg1[%c0, %c0_0] : memref<60x1xi32, #tpu.memory_space<vmem>>, vector<60x1xi32>
    %c255_i32 = arith.constant 255 : i32
    %1 = vector.broadcast %c255_i32 : i32 to vector<60x1xi32>
    %2 = arith.andi %0, %1 : vector<60x1xi32>
    %c8_i32 = arith.constant 8 : i32
    %3 = vector.broadcast %c8_i32 : i32 to vector<60x1xi32>
    %4 = arith.shrsi %0, %3 : vector<60x1xi32>
    %c255_i32_1 = arith.constant 255 : i32
    %5 = vector.broadcast %c255_i32_1 : i32 to vector<60x1xi32>
    %6 = arith.andi %4, %5 : vector<60x1xi32>
    %c16_i32 = arith.constant 16 : i32
    %7 = vector.broadcast %c16_i32 : i32 to vector<60x1xi32>
    %8 = arith.shrsi %0, %7 : vector<60x1xi32>
    %9 = tpu.iota {dimensions = array<i32: 1>} : vector<1x128xi32>
    %10 = vector.broadcast %2 : vector<60x1xi32> to vector<60x128xi32>
    %11 = vector.broadcast %9 : vector<1x128xi32> to vector<60x128xi32>
    %12 = arith.cmpi eq, %10, %11 : vector<60x128xi32>
    %13 = vector.broadcast %6 : vector<60x1xi32> to vector<60x128xi32>
    %14 = vector.broadcast %9 : vector<1x128xi32> to vector<60x128xi32>
    %15 = arith.cmpi eq, %13, %14 : vector<60x128xi32>
    %16 = arith.ori %12, %15 : vector<60x128xi1>
    %17 = vector.broadcast %8 : vector<60x1xi32> to vector<60x128xi32>
    %18 = vector.broadcast %9 : vector<1x128xi32> to vector<60x128xi32>
    %19 = arith.cmpi eq, %17, %18 : vector<60x128xi32>
    %20 = arith.ori %16, %19 : vector<60x128xi1>
    %21 = arith.extui %20 : vector<60x128xi1> to vector<60x128xi32>
    %22 = arith.sitofp %21 : vector<60x128xi32> to vector<60x128xf32>
    %c0_2 = arith.constant 0 : index
    %c0_3 = arith.constant 0 : index
    %23 = vector.load %arg2[%c0_2, %c0_3] : memref<128x768xf32, #tpu.memory_space<vmem>>, vector<128x768xf32>
    %cst = arith.constant dense<0.000000e+00> : vector<60x768xf32>
    %24 = tpu.matmul %22, %23, %cst {dimension_numbers = #tpu.dot_dimension_numbers<[1], [0], [0], [1], [0, 0, 1, 1], [], []>} : vector<60x128xf32>, vector<128x768xf32>, vector<60x768xf32> -> vector<60x768xf32>
    %cst_4 = arith.constant dense<0.000000e+00> : vector<60xf32>
    %25 = vector.multi_reduction <add>, %24, %cst_4 [1] : vector<60x768xf32> to vector<60xf32>
    %26 = vector.shape_cast %25 : vector<60xf32> to vector<60x1xf32>
    %27 = arith.mulf %24, %24 : vector<60x768xf32>
    %cst_5 = arith.constant dense<0.000000e+00> : vector<60xf32>
    %28 = vector.multi_reduction <add>, %27, %cst_5 [1] : vector<60x768xf32> to vector<60xf32>
    %29 = vector.shape_cast %28 : vector<60xf32> to vector<60x1xf32>
    %cst_6 = arith.constant 0.00130208337 : f32
    %30 = vector.broadcast %cst_6 : f32 to vector<60x1xf32>
    %31 = arith.mulf %26, %30 : vector<60x1xf32>
    %cst_7 = arith.constant 0.00130208337 : f32
    %32 = vector.broadcast %cst_7 : f32 to vector<60x1xf32>
    %33 = arith.mulf %29, %32 : vector<60x1xf32>
    %34 = arith.mulf %31, %31 : vector<60x1xf32>
    %35 = arith.subf %33, %34 : vector<60x1xf32>
    %cst_8 = arith.constant 0.000000e+00 : f32
    %36 = vector.broadcast %cst_8 : f32 to vector<60x1xf32>
    %37 = arith.maximumf %35, %36 : vector<60x1xf32>
    %cst_9 = arith.constant 9.99999974E-6 : f32
    %38 = vector.broadcast %cst_9 : f32 to vector<60x1xf32>
    %39 = arith.addf %37, %38 : vector<60x1xf32>
    %40 = math.rsqrt %39 : vector<60x1xf32>
    %41 = vector.broadcast %31 : vector<60x1xf32> to vector<60x768xf32>
    %42 = arith.subf %24, %41 : vector<60x768xf32>
    %43 = vector.broadcast %40 : vector<60x1xf32> to vector<60x768xf32>
    %44 = arith.mulf %42, %43 : vector<60x768xf32>
    %c0_10 = arith.constant 0 : index
    %c0_11 = arith.constant 0 : index
    %45 = vector.load %arg3[%c0_10, %c0_11] : memref<1x768xf32, #tpu.memory_space<vmem>>, vector<1x768xf32>
    %46 = vector.broadcast %45 : vector<1x768xf32> to vector<60x768xf32>
    %47 = arith.mulf %44, %46 : vector<60x768xf32>
    %c0_12 = arith.constant 0 : index
    %c0_13 = arith.constant 0 : index
    %48 = vector.load %arg4[%c0_12, %c0_13] : memref<1x768xf32, #tpu.memory_space<vmem>>, vector<1x768xf32>
    %49 = vector.broadcast %48 : vector<1x768xf32> to vector<60x768xf32>
    %50 = arith.addf %47, %49 : vector<60x768xf32>
    %c0_14 = arith.constant 0 : index
    %c0_15 = arith.constant 0 : index
    %51 = vector.load %arg5[%c0_14, %c0_15] : memref<60x768xf32, #tpu.memory_space<vmem>>, vector<60x768xf32>
    tpu.vector_store %arg5[%c0_14, %c0_15], %50 {strides = array<i32>} : memref<60x768xf32, #tpu.memory_space<vmem>>, vector<60x768xf32>,
    return
  }
  func.func @transform_0(%arg0: i32) -> (i32, i32) {
    %c0_i32 = arith.constant 0 : i32
    %c0_i32_0 = arith.constant 0 : i32
    return %arg0, %c0_i32 : i32, i32
  }
  func.func @transform_1(%arg0: i32) -> (i32, i32) {
    %c0_i32 = arith.constant 0 : i32
    %c0_i32_0 = arith.constant 0 : i32
    %c0_i32_1 = arith.constant 0 : i32
    return %c0_i32, %c0_i32_0 : i32, i32
  }
  func.func @transform_2(%arg0: i32) -> (i32, i32) {
    %c0_i32 = arith.constant 0 : i32
    %c0_i32_0 = arith.constant 0 : i32
    %c0_i32_1 = arith.constant 0 : i32
    return %c0_i32, %c0_i32_0 : i32, i32
  }
  func.func @transform_3(%arg0: i32) -> (i32, i32) {
    %c0_i32 = arith.constant 0 : i32
    %c0_i32_0 = arith.constant 0 : i32
    %c0_i32_1 = arith.constant 0 : i32
    return %c0_i32, %c0_i32_0 : i32, i32
  }
  func.func @transform_4(%arg0: i32) -> (i32, i32) {
    %c0_i32 = arith.constant 0 : i32
    %c0_i32_0 = arith.constant 0 : i32
    return %arg0, %c0_i32 : i32, i32
  }
}

</mosaic_0001>

<llo_original>
// kernel: tpu_custom_call.1
$region0: #{tpu_custom_call.1}
  #allocation0 [shape = 'u32[]', space=smem, size = 0x4, offset = 0x4, fixed_abs, tag = 'smem constant byte address 0x4 - core index']
  #allocation1 [shape = 'u32[72,128]{1,0:T(1,128)}', space=vmem, size = 0x9000, scoped, tag = 'internal scratch']
  %s0 = inlined_call_operand.vmem [shape: s32[60,1], index: 0, kind: input, shape index: {}]
  %s1 = inlined_call_operand.hbm [shape: f32[128,768], index: 1, kind: input, shape index: {}]
  %s2 = inlined_call_operand.vmem [shape: f32[1,768], index: 2, kind: input, shape index: {}]
  %s3 = inlined_call_operand.vmem [shape: f32[1,768], index: 3, kind: input, shape index: {}]
  %s4 = inlined_call_operand.hbm [shape: f32[60,768], index: 4, kind: output, shape index: {}]
  %s5 = sld [smem:[#allocation0]]
  $region30: #{tpu_custom_call.1} parent=0
    _
  %s7 = ssub.s32 1, %s5
  %s8 = scalar_select 0, %s7, %s5
  $region1: #{tpu_custom_call.1} parent=0
    #allocation2 [shape = 'u8[393216]{0}', space=vmem, size = 0x60000, scoped, tag = 'input window, operand 1, single buffered']
    #allocation3 [shape = 's32[1]{0}', space=sflag, size = 0x4, scoped, tag = 'scoped memory for tpu_custom_call.1']
    #allocation4 [shape = 's32[1]{0}', space=sflag, size = 0x4, scoped, tag = 'scoped memory for tpu_custom_call.1']
    #allocation5 [shape = 'u8[196608]{0}', space=vmem, size = 0x30000, scoped, tag = 'output window, operand 0, single buffered']
    %9 = vsyncpa [#allocation3], 0
    %10 = vsyncpa [#allocation4], 0
    // Predicated region
    $region2: #{tpu_custom_call.1} parent=1 // pred_check
      _
    $region3: #{tpu_custom_call.1} parent=1 // pred_check_branch
      %12 = sbr.rel (0) target = $region5
    $region4: #{tpu_custom_call.1} parent=1 // pred_region
      _
    $region5: #{tpu_custom_call.1} parent=1 // pred_fallthru
      _
    // Predicated region
    $region6: #{tpu_custom_call.1} parent=1 // pred_check
      _
    $region7: #{tpu_custom_call.1} parent=1 // pred_check_branch
      %14 = sbr.rel (0) target = $region9
    $region8: #{tpu_custom_call.1} parent=1 // pred_region
      %16 = vsyncadd [#allocation3], 0
      %s17 = sshll.u32 %s1, 4
      %s18 = int_to_ptr.hbm [resolvable:$true] %s17
      %s19 = sshll.u32 [#allocation2], 4
      %s20 = int_to_ptr.vmem [resolvable:$true] %s19
      %25 = dma.hbm_to_vmem [thread:$0]  %s18, 12288, %s20, [#allocation3], 768, 768, 48
    $region9: #{tpu_custom_call.1} parent=1 // pred_fallthru
      _
    // Predicated region
    $region10: #{tpu_custom_call.1} parent=1 // pred_check
      _
    $region11: #{tpu_custom_call.1} parent=1 // pred_check_branch
      %27 = sbr.rel (0) target = $region13
    $region12: #{tpu_custom_call.1} parent=1 // pred_region
      _
    $region13: #{tpu_custom_call.1} parent=1 // pred_fallthru
      _
    // Predicated region
    $region14: #{tpu_custom_call.1} parent=1 // pred_check
      _
    $region15: #{tpu_custom_call.1} parent=1 // pred_check_branch
      %29 = sbr.rel (0) target = $region17
    $region16: #{tpu_custom_call.1} parent=1 // pred_region
      _
    $region17: #{tpu_custom_call.1} parent=1 // pred_fallthru
      _
    // Predicated region
    $region18: #{tpu_custom_call.1} parent=1 // pred_check
      _
    $region19: #{tpu_custom_call.1} parent=1 // pred_check_branch
      %31 = sbr.rel (0) target = $region21
    $region20: #{tpu_custom_call.1} parent=1 // pred_region
      %33 = dma.done [#allocation3], 12288
    $region21: #{tpu_custom_call.1} parent=1 // pred_fallthru
      _
    %v34 = vld [vmem:[%s0] sm:$0xff]
    %v35 = vld [vmem:[%s0 + $0x8] sm:$0xff]
    %v36 = vld [vmem:[%s0 + $0x10] sm:$0xff]
    %v37 = vld [vmem:[%s0 + $0x18] sm:$0xff]
    %v38 = vld [vmem:[%s0 + $0x20] sm:$0xff]
    %v39 = vld [vmem:[%s0 + $0x28] sm:$0xff]
    %v40 = vld [vmem:[%s0 + $0x30] sm:$0xff]
    %v41 = vld [vmem:[%s0 + $0x38] sm:$0xf]
    %v42 = vand.u32 %v34, 255
    %v43 = vand.u32 %v35, 255
    %v44 = vand.u32 %v36, 255
    %v45 = vand.u32 %v37, 255
    %v46 = vand.u32 %v38, 255
    %v47 = vand.u32 %v39, 255
    %v48 = vand.u32 %v40, 255
    %v49 = vand.u32 %v41, 255
    %v50 = vshra.s32 %v34, 8
    %v51 = vshra.s32 %v35, 8
    %v52 = vshra.s32 %v36, 8
    %v53 = vshra.s32 %v37, 8
    %v54 = vshra.s32 %v38, 8
    %v55 = vshra.s32 %v39, 8
    %v56 = vshra.s32 %v40, 8
    %v57 = vshra.s32 %v41, 8
    %v58 = vand.u32 %v50, 255
    %v59 = vand.u32 %v51, 255
    %v60 = vand.u32 %v52, 255
    %v61 = vand.u32 %v53, 255
    %v62 = vand.u32 %v54, 255
    %v63 = vand.u32 %v55, 255
    %v64 = vand.u32 %v56, 255
    %v65 = vand.u32 %v57, 255
    %v66 = vshra.s32 %v34, 16
    %v67 = vshra.s32 %v35, 16
    %v68 = vshra.s32 %v36, 16
    %v69 = vshra.s32 %v37, 16
    %v70 = vshra.s32 %v38, 16
    %v71 = vshra.s32 %v39, 16
    %v72 = vshra.s32 %v40, 16
    %v73 = vshra.s32 %v41, 16
    %v74 = vlaneseq
    %v75 = vand.u32 %v74, 127
    %76 = vset.pattern.permute.xlu0 0
    %77 = vperm.xlu0 %76, %v42
    %v78 = vpop.permute.xlu0 %77
    %79 = vset.pattern.permute.xlu0 0
    %80 = vperm.xlu0 %79, %v43
    %v81 = vpop.permute.xlu0 %80
    %82 = vset.pattern.permute.xlu0 0
    %83 = vperm.xlu0 %82, %v44
    %v84 = vpop.permute.xlu0 %83
    %85 = vset.pattern.permute.xlu0 0
    %86 = vperm.xlu0 %85, %v45
    %v87 = vpop.permute.xlu0 %86
    %88 = vset.pattern.permute.xlu0 0
    %89 = vperm.xlu0 %88, %v46
    %v90 = vpop.permute.xlu0 %89
    %91 = vset.pattern.permute.xlu0 0
    %92 = vperm.xlu0 %91, %v47
    %v93 = vpop.permute.xlu0 %92
    %94 = vset.pattern.permute.xlu0 0
    %95 = vperm.xlu0 %94, %v48
    %v96 = vpop.permute.xlu0 %95
    %97 = vset.pattern.permute.xlu0 0
    %98 = vperm.xlu0 %97, %v49
    %v99 = vpop.permute.xlu0 %98
    %vm100 = vcmp.eq.s32.totalorder %v78, %v75
    %vm101 = vcmp.eq.s32.totalorder %v81, %v75
    %vm102 = vcmp.eq.s32.totalorder %v84, %v75
    %vm103 = vcmp.eq.s32.totalorder %v87, %v75
    %vm104 = vcmp.eq.s32.totalorder %v90, %v75
    %vm105 = vcmp.eq.s32.totalorder %v93, %v75
    %vm106 = vcmp.eq.s32.totalorder %v96, %v75
    %vm107 = vcmp.eq.s32.totalorder %v99, %v75
    %108 = vset.pattern.permute.xlu0 0
    %109 = vperm.xlu0 %108, %v58
    %v110 = vpop.permute.xlu0 %109
    %111 = vset.pattern.permute.xlu0 0
    %112 = vperm.xlu0 %111, %v59
    %v113 = vpop.permute.xlu0 %112
    %114 = vset.pattern.permute.xlu0 0
    %115 = vperm.xlu0 %114, %v60
    %v116 = vpop.permute.xlu0 %115
    %117 = vset.pattern.permute.xlu0 0
    %118 = vperm.xlu0 %117, %v61
    %v119 = vpop.permute.xlu0 %118
    %120 = vset.pattern.permute.xlu0 0
    %121 = vperm.xlu0 %120, %v62
    %v122 = vpop.permute.xlu0 %121
    %123 = vset.pattern.permute.xlu0 0
    %124 = vperm.xlu0 %123, %v63
    %v125 = vpop.permute.xlu0 %124
    %126 = vset.pattern.permute.xlu0 0
    %127 = vperm.xlu0 %126, %v64
    %v128 = vpop.permute.xlu0 %127
    %129 = vset.pattern.permute.xlu0 0
    %130 = vperm.xlu0 %129, %v65
    %v131 = vpop.permute.xlu0 %130
    %vm132 = vcmp.eq.s32.totalorder %v110, %v75
    %vm133 = vcmp.eq.s32.totalorder %v113, %v75
    %vm134 = vcmp.eq.s32.totalorder %v116, %v75
    %vm135 = vcmp.eq.s32.totalorder %v119, %v75
    %vm136 = vcmp.eq.s32.totalorder %v122, %v75
    %vm137 = vcmp.eq.s32.totalorder %v125, %v75
    %vm138 = vcmp.eq.s32.totalorder %v128, %v75
    %vm139 = vcmp.eq.s32.totalorder %v131, %v75
    %vm140 = vmor %vm100, %vm132
    %vm141 = vmor %vm101, %vm133
    %vm142 = vmor %vm102, %vm134
    %vm143 = vmor %vm103, %vm135
    %vm144 = vmor %vm104, %vm136
    %vm145 = vmor %vm105, %vm137
    %vm146 = vmor %vm106, %vm138
    %vm147 = vmor %vm107, %vm139
    %148 = vset.pattern.permute.xlu0 0
    %149 = vperm.xlu0 %148, %v66
    %v150 = vpop.permute.xlu0 %149
    %151 = vset.pattern.permute.xlu0 0
    %152 = vperm.xlu0 %151, %v67
    %v153 = vpop.permute.xlu0 %152
    %154 = vset.pattern.permute.xlu0 0
    %155 = vperm.xlu0 %154, %v68
    %v156 = vpop.permute.xlu0 %155
    %157 = vset.pattern.permute.xlu0 0
    %158 = vperm.xlu0 %157, %v69
    %v159 = vpop.permute.xlu0 %158
    %160 = vset.pattern.permute.xlu0 0
    %161 = vperm.xlu0 %160, %v70
    %v162 = vpop.permute.xlu0 %161
    %163 = vset.pattern.permute.xlu0 0
    %164 = vperm.xlu0 %163, %v71
    %v165 = vpop.permute.xlu0 %164
    %166 = vset.pattern.permute.xlu0 0
    %167 = vperm.xlu0 %166, %v72
    %v168 = vpop.permute.xlu0 %167
    %169 = vset.pattern.permute.xlu0 0
    %170 = vperm.xlu0 %169, %v73
    %v171 = vpop.permute.xlu0 %170
    %vm172 = vcmp.eq.s32.totalorder %v150, %v75
    %vm173 = vcmp.eq.s32.totalorder %v153, %v75
    %vm174 = vcmp.eq.s32.totalorder %v156, %v75
    %vm175 = vcmp.eq.s32.totalorder %v159, %v75
    %vm176 = vcmp.eq.s32.totalorder %v162, %v75
    %vm177 = vcmp.eq.s32.totalorder %v165, %v75
    %vm178 = vcmp.eq.s32.totalorder %v168, %v75
    %vm179 = vcmp.eq.s32.totalorder %v171, %v75
    %vm180 = vmor %vm140, %vm172
    %vm181 = vmor %vm141, %vm173
    %vm182 = vmor %vm142, %vm174
    %vm183 = vmor %vm143, %vm175
    %vm184 = vmor %vm144, %vm176
    %vm185 = vmor %vm145, %vm177
    %vm186 = vmor %vm146, %vm178
    %vm187 = vmor %vm147, %vm179
    %v188 = vsel %vm180, 1, 0
    %v189 = vsel %vm181, 1, 0
    %v190 = vsel %vm182, 1, 0
    %v191 = vsel %vm183, 1, 0
    %v192 = vsel %vm184, 1, 0
    %v193 = vsel %vm185, 1, 0
    %v194 = vsel %vm186, 1, 0
    %v195 = vsel %vm187, 1, 0
    %v196 = vcvt.s32.f32 %v188
    %v197 = vcvt.s32.f32 %v189
    %v198 = vcvt.s32.f32 %v190
    %v199 = vcvt.s32.f32 %v191
    %v200 = vcvt.s32.f32 %v192
    %v201 = vcvt.s32.f32 %v193
    %v202 = vcvt.s32.f32 %v194
    %v203 = vcvt.s32.f32 %v195
    %v204 = vld [vmem:[#allocation2] sm:$0xff]
    %v205 = vld [vmem:[#allocation2 + $0x8] sm:$0xff]
    %v206 = vld [vmem:[#allocation2 + $0x10] sm:$0xff]
    %v207 = vld [vmem:[#allocation2 + $0x18] sm:$0xff]
    %v208 = vld [vmem:[#allocation2 + $0x20] sm:$0xff]
    %v209 = vld [vmem:[#allocation2 + $0x28] sm:$0xff]
    %v210 = vld [vmem:[#allocation2 + $0x30] sm:$0xff]
    %v211 = vld [vmem:[#allocation2 + $0x38] sm:$0xff]
    %v212 = vld [vmem:[#allocation2 + $0x40] sm:$0xff]
    %v213 = vld [vmem:[#allocation2 + $0x48] sm:$0xff]
    %v214 = vld [vmem:[#allocation2 + $0x50] sm:$0xff]
    %v215 = vld [vmem:[#allocation2 + $0x58] sm:$0xff]
    %v216 = vld [vmem:[#allocation2 + $0x60] sm:$0xff]
    %v217 = vld [vmem:[#allocation2 + $0x68] sm:$0xff]
    %v218 = vld [vmem:[#allocation2 + $0x70] sm:$0xff]
    %v219 = vld [vmem:[#allocation2 + $0x78] sm:$0xff]
    %v220 = vld [vmem:[#allocation2 + $0x80] sm:$0xff]
    %v221 = vld [vmem:[#allocation2 + $0x88] sm:$0xff]
    %v222 = vld [vmem:[#allocation2 + $0x90] sm:$0xff]
    %v223 = vld [vmem:[#allocation2 + $0x98] sm:$0xff]
    %v224 = vld [vmem:[#allocation2 + $0xa0] sm:$0xff]
    %v225 = vld [vmem:[#allocation2 + $0xa8] sm:$0xff]
    %v226 = vld [vmem:[#allocation2 + $0xb0] sm:$0xff]
    %v227 = vld [vmem:[#allocation2 + $0xb8] sm:$0xff]
    %v228 = vld [vmem:[#allocation2 + $0xc0] sm:$0xff]
    %v229 = vld [vmem:[#allocation2 + $0xc8] sm:$0xff]
    %v230 = vld [vmem:[#allocation2 + $0xd0] sm:$0xff]
    %v231 = vld [vmem:[#allocation2 + $0xd8] sm:$0xff]
    %v232 = vld [vmem:[#allocation2 + $0xe0] sm:$0xff]
    %v233 = vld [vmem:[#allocation2 + $0xe8] sm:$0xff]
    %v234 = vld [vmem:[#allocation2 + $0xf0] sm:$0xff]
    %v235 = vld [vmem:[#allocation2 + $0xf8] sm:$0xff]
    %v236 = vld [vmem:[#allocation2 + $0x100] sm:$0xff]
    %v237 = vld [vmem:[#allocation2 + $0x108] sm:$0xff]
    %v238 = vld [vmem:[#allocation2 + $0x110] sm:$0xff]
    %v239 = vld [vmem:[#allocation2 + $0x118] sm:$0xff]
    %v240 = vld [vmem:[#allocation2 + $0x120] sm:$0xff]
    %v241 = vld [vmem:[#allocation2 + $0x128] sm:$0xff]
    %v242 = vld [vmem:[#allocation2 + $0x130] sm:$0xff]
    %v243 = vld [vmem:[#allocation2 + $0x138] sm:$0xff]
    %v244 = vld [vmem:[#allocation2 + $0x140] sm:$0xff]
    %v245 = vld [vmem:[#allocation2 + $0x148] sm:$0xff]
    %v246 = vld [vmem:[#allocation2 + $0x150] sm:$0xff]
    %v247 = vld [vmem:[#allocation2 + $0x158] sm:$0xff]
    %v248 = vld [vmem:[#allocation2 + $0x160] sm:$0xff]
    %v249 = vld [vmem:[#allocation2 + $0x168] sm:$0xff]
    %v250 = vld [vmem:[#allocation2 + $0x170] sm:$0xff]
    %v251 = vld [vmem:[#allocation2 + $0x178] sm:$0xff]
    %v252 = vld [vmem:[#allocation2 + $0x180] sm:$0xff]
    %v253 = vld [vmem:[#allocation2 + $0x188] sm:$0xff]
    %v254 = vld [vmem:[#allocation2 + $0x190] sm:$0xff]
    %v255 = vld [vmem:[#allocation2 + $0x198] sm:$0xff]
    %v256 = vld [vmem:[#allocation2 + $0x1a0] sm:$0xff]
    %v257 = vld [vmem:[#allocation2 + $0x1a8] sm:$0xff]
    %v258 = vld [vmem:[#allocation2 + $0x1b0] sm:$0xff]
    %v259 = vld [vmem:[#allocation2 + $0x1b8] sm:$0xff]
    %v260 = vld [vmem:[#allocation2 + $0x1c0] sm:$0xff]
    %v261 = vld [vmem:[#allocation2 + $0x1c8] sm:$0xff]
    %v262 = vld [vmem:[#allocation2 + $0x1d0] sm:$0xff]
    %v263 = vld [vmem:[#allocation2 + $0x1d8] sm:$0xff]
    %v264 = vld [vmem:[#allocation2 + $0x1e0] sm:$0xff]
    %v265 = vld [vmem:[#allocation2 + $0x1e8] sm:$0xff]
    %v266 = vld [vmem:[#allocation2 + $0x1f0] sm:$0xff]
    %v267 = vld [vmem:[#allocation2 + $0x1f8] sm:$0xff]
    %v268 = vld [vmem:[#allocation2 + $0x200] sm:$0xff]
    %v269 = vld [vmem:[#allocation2 + $0x208] sm:$0xff]
    %v270 = vld [vmem:[#allocation2 + $0x210] sm:$0xff]
    %v271 = vld [vmem:[#allocation2 + $0x218] sm:$0xff]
    %v272 = vld [vmem:[#allocation2 + $0x220] sm:$0xff]
    %v273 = vld [vmem:[#allocation2 + $0x228] sm:$0xff]
    %v274 = vld [vmem:[#allocation2 + $0x230] sm:$0xff]
    %v275 = vld [vmem:[#allocation2 + $0x238] sm:$0xff]
    %v276 = vld [vmem:[#allocation2 + $0x240] sm:$0xff]
    %v277 = vld [vmem:[#allocation2 + $0x248] sm:$0xff]
    %v278 = vld [vmem:[#allocation2 + $0x250] sm:$0xff]
    %v279 = vld [vmem:[#allocation2 + $0x258] sm:$0xff]
    %v280 = vld [vmem:[#allocation2 + $0x260] sm:$0xff]
    %v281 = vld [vmem:[#allocation2 + $0x268] sm:$0xff]
    %v282 = vld [vmem:[#allocation2 + $0x270] sm:$0xff]
    %v283 = vld [vmem:[#allocation2 + $0x278] sm:$0xff]
    %v284 = vld [vmem:[#allocation2 + $0x280] sm:$0xff]
    %v285 = vld [vmem:[#allocation2 + $0x288] sm:$0xff]
    %v286 = vld [vmem:[#allocation2 + $0x290] sm:$0xff]
    %v287 = vld [vmem:[#allocation2 + $0x298] sm:$0xff]
    %v288 = vld [vmem:[#allocation2 + $0x2a0] sm:$0xff]
    %v289 = vld [vmem:[#allocation2 + $0x2a8] sm:$0xff]
    %v290 = vld [vmem:[#allocation2 + $0x2b0] sm:$0xff]
    %v291 = vld [vmem:[#allocation2 + $0x2b8] sm:$0xff]
    %v292 = vld [vmem:[#allocation2 + $0x2c0] sm:$0xff]
    %v293 = vld [vmem:[#allocation2 + $0x2c8] sm:$0xff]
    %v294 = vld [vmem:[#allocation2 + $0x2d0] sm:$0xff]
    %v295 = vld [vmem:[#allocation2 + $0x2d8] sm:$0xff]
    %v296 = vld [vmem:[#allocation2 + $0x2e0] sm:$0xff]
    %v297 = vld [vmem:[#allocation2 + $0x2e8] sm:$0xff]
    %v298 = vld [vmem:[#allocation2 + $0x2f0] sm:$0xff]
    %v299 = vld [vmem:[#allocation2 + $0x2f8] sm:$0xff]
    %300 = vmatpush.msra.mxu0 %v294
    %301 = vmatpush.msra.mxu0 %v288
    %302 = vmatpush.msra.mxu0 %v282
    %303 = vmatpush.msra.mxu0 %v276
    %304 = vmatpush.msra.mxu0 %v270
    %305 = vmatpush.msra.mxu0 %v264
    %306 = vmatpush.msra.mxu0 %v258
    %307 = vmatpush.msra.mxu0 %v252
    %308 = vmatpush.msra.mxu0 %v246
    %309 = vmatpush.msra.mxu0 %v240
    %310 = vmatpush.msra.mxu0 %v234
    %311 = vmatpush.msra.mxu0 %v228
    %312 = vmatpush.msra.mxu0 %v222
    %313 = vmatpush.msra.mxu0 %v216
    %314 = vmatpush.msra.mxu0 %v210
    %315 = vmatpush.msra.mxu0 %v204
    %316 = vmatmul.f32.gmra.mxu0 %v196
    %v317 = vpop.f32.mrf.mxu0
    %v318 = vadd.f32 0.0, %v317
    %319 = vmatmul.f32.gmra.mxu0 %v197
    %v320 = vpop.f32.mrf.mxu0
    %v321 = vadd.f32 0.0, %v320
    %322 = vmatmul.f32.gmra.mxu0 %v198
    %v323 = vpop.f32.mrf.mxu0
    %v324 = vadd.f32 0.0, %v323
    %325 = vmatmul.f32.gmra.mxu0 %v199
    %v326 = vpop.f32.mrf.mxu0
    %v327 = vadd.f32 0.0, %v326
    %328 = vmatmul.f32.gmra.mxu0 %v200
    %v329 = vpop.f32.mrf.mxu0
    %v330 = vadd.f32 0.0, %v329
    %331 = vmatmul.f32.gmra.mxu0 %v201
    %v332 = vpop.f32.mrf.mxu0
    %v333 = vadd.f32 0.0, %v332
    %334 = vmatmul.f32.gmra.mxu0 %v202
    %v335 = vpop.f32.mrf.mxu0
    %v336 = vadd.f32 0.0, %v335
    %337 = vmatmul.f32.gmra.mxu0 %v203
    %v338 = vpop.f32.mrf.mxu0
    %v339 = vadd.f32 0.0, %v338
    %340 = vdwg.mxu0
    %341 = vmatpush.msra.mxu0 %v295
    %342 = vmatpush.msra.mxu0 %v289
    %343 = vmatpush.msra.mxu0 %v283
    %344 = vmatpush.msra.mxu0 %v277
    %345 = vmatpush.msra.mxu0 %v271
    %346 = vmatpush.msra.mxu0 %v265
    %347 = vmatpush.msra.mxu0 %v259
    %348 = vmatpush.msra.mxu0 %v253
    %349 = vmatpush.msra.mxu0 %v247
    %350 = vmatpush.msra.mxu0 %v241
    %351 = vmatpush.msra.mxu0 %v235
    %352 = vmatpush.msra.mxu0 %v229
    %353 = vmatpush.msra.mxu0 %v223
    %354 = vmatpush.msra.mxu0 %v217
    %355 = vmatpush.msra.mxu0 %v211
    %356 = vmatpush.msra.mxu0 %v205
    %357 = vmatmul.f32.gmra.mxu0 %v196
    %v358 = vpop.f32.mrf.mxu0
    %v359 = vadd.f32 0.0, %v358
    %360 = vmatmul.f32.gmra.mxu0 %v197
    %v361 = vpop.f32.mrf.mxu0
    %v362 = vadd.f32 0.0, %v361
    %363 = vmatmul.f32.gmra.mxu0 %v198
    %v364 = vpop.f32.mrf.mxu0
    %v365 = vadd.f32 0.0, %v364
    %366 = vmatmul.f32.gmra.mxu0 %v199
    %v367 = vpop.f32.mrf.mxu0
    %v368 = vadd.f32 0.0, %v367
    %369 = vmatmul.f32.gmra.mxu0 %v200
    %v370 = vpop.f32.mrf.mxu0
    %v371 = vadd.f32 0.0, %v370
    %372 = vmatmul.f32.gmra.mxu0 %v201
    %v373 = vpop.f32.mrf.mxu0
    %v374 = vadd.f32 0.0, %v373
    %375 = vmatmul.f32.gmra.mxu0 %v202
    %v376 = vpop.f32.mrf.mxu0
    %v377 = vadd.f32 0.0, %v376
    %378 = vmatmul.f32.gmra.mxu0 %v203
    %v379 = vpop.f32.mrf.mxu0
    %v380 = vadd.f32 0.0, %v379
    %381 = vdwg.mxu0
    %382 = vmatpush.msra.mxu0 %v296
    %383 = vmatpush.msra.mxu0 %v290
    %384 = vmatpush.msra.mxu0 %v284
    %385 = vmatpush.msra.mxu0 %v278
    %386 = vmatpush.msra.mxu0 %v272
    %387 = vmatpush.msra.mxu0 %v266
    %388 = vmatpush.msra.mxu0 %v260
    %389 = vmatpush.msra.mxu0 %v254
    %390 = vmatpush.msra.mxu0 %v248
    %391 = vmatpush.msra.mxu0 %v242
    %392 = vmatpush.msra.mxu0 %v236
    %393 = vmatpush.msra.mxu0 %v230
    %394 = vmatpush.msra.mxu0 %v224
    %395 = vmatpush.msra.mxu0 %v218
    %396 = vmatpush.msra.mxu0 %v212
    %397 = vmatpush.msra.mxu0 %v206
    %398 = vmatmul.f32.gmra.mxu0 %v196
    %v399 = vpop.f32.mrf.mxu0
    %v400 = vadd.f32 0.0, %v399
    %401 = vmatmul.f32.gmra.mxu0 %v197
    %v402 = vpop.f32.mrf.mxu0
    %v403 = vadd.f32 0.0, %v402
    %404 = vmatmul.f32.gmra.mxu0 %v198
    %v405 = vpop.f32.mrf.mxu0
    %v406 = vadd.f32 0.0, %v405
    %407 = vmatmul.f32.gmra.mxu0 %v199
    %v408 = vpop.f32.mrf.mxu0
    %v409 = vadd.f32 0.0, %v408
    %410 = vmatmul.f32.gmra.mxu0 %v200
    %v411 = vpop.f32.mrf.mxu0
    %v412 = vadd.f32 0.0, %v411
    %413 = vmatmul.f32.gmra.mxu0 %v201
    %v414 = vpop.f32.mrf.mxu0
    %v415 = vadd.f32 0.0, %v414
    %416 = vmatmul.f32.gmra.mxu0 %v202
    %v417 = vpop.f32.mrf.mxu0
    %v418 = vadd.f32 0.0, %v417
    %419 = vmatmul.f32.gmra.mxu0 %v203
    %v420 = vpop.f32.mrf.mxu0
    %v421 = vadd.f32 0.0, %v420
    %422 = vdwg.mxu0
    %423 = vmatpush.msra.mxu0 %v297
    %424 = vmatpush.msra.mxu0 %v291
    %425 = vmatpush.msra.mxu0 %v285
    %426 = vmatpush.msra.mxu0 %v279
    %427 = vmatpush.msra.mxu0 %v273
    %428 = vmatpush.msra.mxu0 %v267
    %429 = vmatpush.msra.mxu0 %v261
    %430 = vmatpush.msra.mxu0 %v255
    %431 = vmatpush.msra.mxu0 %v249
    %432 = vmatpush.msra.mxu0 %v243
    %433 = vmatpush.msra.mxu0 %v237
    %434 = vmatpush.msra.mxu0 %v231
    %435 = vmatpush.msra.mxu0 %v225
    %436 = vmatpush.msra.mxu0 %v219
    %437 = vmatpush.msra.mxu0 %v213
    %438 = vmatpush.msra.mxu0 %v207
    %439 = vmatmul.f32.gmra.mxu0 %v196
    %v440 = vpop.f32.mrf.mxu0
    %v441 = vadd.f32 0.0, %v440
    %442 = vmatmul.f32.gmra.mxu0 %v197
    %v443 = vpop.f32.mrf.mxu0
    %v444 = vadd.f32 0.0, %v443
    %445 = vmatmul.f32.gmra.mxu0 %v198
    %v446 = vpop.f32.mrf.mxu0
    %v447 = vadd.f32 0.0, %v446
    %448 = vmatmul.f32.gmra.mxu0 %v199
    %v449 = vpop.f32.mrf.mxu0
    %v450 = vadd.f32 0.0, %v449
    %451 = vmatmul.f32.gmra.mxu0 %v200
    %v452 = vpop.f32.mrf.mxu0
    %v453 = vadd.f32 0.0, %v452
    %454 = vmatmul.f32.gmra.mxu0 %v201
    %v455 = vpop.f32.mrf.mxu0
    %v456 = vadd.f32 0.0, %v455
    %457 = vmatmul.f32.gmra.mxu0 %v202
    %v458 = vpop.f32.mrf.mxu0
    %v459 = vadd.f32 0.0, %v458
    %460 = vmatmul.f32.gmra.mxu0 %v203
    %v461 = vpop.f32.mrf.mxu0
    %v462 = vadd.f32 0.0, %v461
    %463 = vdwg.mxu0
    %464 = vmatpush.msra.mxu0 %v298
    %465 = vmatpush.msra.mxu0 %v292
    %466 = vmatpush.msra.mxu0 %v286
    %467 = vmatpush.msra.mxu0 %v280
    %468 = vmatpush.msra.mxu0 %v274
    %469 = vmatpush.msra.mxu0 %v268
    %470 = vmatpush.msra.mxu0 %v262
    %471 = vmatpush.msra.mxu0 %v256
    %472 = vmatpush.msra.mxu0 %v250
    %473 = vmatpush.msra.mxu0 %v244
    %474 = vmatpush.msra.mxu0 %v238
    %475 = vmatpush.msra.mxu0 %v232
    %476 = vmatpush.msra.mxu0 %v226
    %477 = vmatpush.msra.mxu0 %v220
    %478 = vmatpush.msra.mxu0 %v214
    %479 = vmatpush.msra.mxu0 %v208
    %480 = vmatmul.f32.gmra.mxu0 %v196
    %v481 = vpop.f32.mrf.mxu0
    %v482 = vadd.f32 0.0, %v481
    %483 = vmatmul.f32.gmra.mxu0 %v197
    %v484 = vpop.f32.mrf.mxu0
    %v485 = vadd.f32 0.0, %v484
    %486 = vmatmul.f32.gmra.mxu0 %v198
    %v487 = vpop.f32.mrf.mxu0
    %v488 = vadd.f32 0.0, %v487
    %489 = vmatmul.f32.gmra.mxu0 %v199
    %v490 = vpop.f32.mrf.mxu0
    %v491 = vadd.f32 0.0, %v490
    %492 = vmatmul.f32.gmra.mxu0 %v200
    %v493 = vpop.f32.mrf.mxu0
    %v494 = vadd.f32 0.0, %v493
    %495 = vmatmul.f32.gmra.mxu0 %v201
    %v496 = vpop.f32.mrf.mxu0
    %v497 = vadd.f32 0.0, %v496
    %498 = vmatmul.f32.gmra.mxu0 %v202
    %v499 = vpop.f32.mrf.mxu0
    %v500 = vadd.f32 0.0, %v499
    %501 = vmatmul.f32.gmra.mxu0 %v203
    %v502 = vpop.f32.mrf.mxu0
    %v503 = vadd.f32 0.0, %v502
    %504 = vdwg.mxu0
    %505 = vmatpush.msra.mxu0 %v299
    %506 = vmatpush.msra.mxu0 %v293
    %507 = vmatpush.msra.mxu0 %v287
    %508 = vmatpush.msra.mxu0 %v281
    %509 = vmatpush.msra.mxu0 %v275
    %510 = vmatpush.msra.mxu0 %v269
    %511 = vmatpush.msra.mxu0 %v263
    %512 = vmatpush.msra.mxu0 %v257
    %513 = vmatpush.msra.mxu0 %v251
    %514 = vmatpush.msra.mxu0 %v245
    %515 = vmatpush.msra.mxu0 %v239
    %516 = vmatpush.msra.mxu0 %v233
    %517 = vmatpush.msra.mxu0 %v227
    %518 = vmatpush.msra.mxu0 %v221
    %519 = vmatpush.msra.mxu0 %v215
    %520 = vmatpush.msra.mxu0 %v209
    %521 = vmatmul.f32.gmra.mxu0 %v196
    %v522 = vpop.f32.mrf.mxu0
    %v523 = vadd.f32 0.0, %v522
    %524 = vmatmul.f32.gmra.mxu0 %v197
    %v525 = vpop.f32.mrf.mxu0
    %v526 = vadd.f32 0.0, %v525
    %527 = vmatmul.f32.gmra.mxu0 %v198
    %v528 = vpop.f32.mrf.mxu0
    %v529 = vadd.f32 0.0, %v528
    %530 = vmatmul.f32.gmra.mxu0 %v199
    %v531 = vpop.f32.mrf.mxu0
    %v532 = vadd.f32 0.0, %v531
    %533 = vmatmul.f32.gmra.mxu0 %v200
    %v534 = vpop.f32.mrf.mxu0
    %v535 = vadd.f32 0.0, %v534
    %536 = vmatmul.f32.gmra.mxu0 %v201
    %v537 = vpop.f32.mrf.mxu0
    %v538 = vadd.f32 0.0, %v537
    %539 = vmatmul.f32.gmra.mxu0 %v202
    %v540 = vpop.f32.mrf.mxu0
    %v541 = vadd.f32 0.0, %v540
    %542 = vmatmul.f32.gmra.mxu0 %v203
    %v543 = vpop.f32.mrf.mxu0
    %v544 = vadd.f32 0.0, %v543
    %545 = vdwg.mxu0
    %v546 = vadd.f32 %v318, %v359
    %v547 = vadd.f32 %v546, %v400
    %v548 = vadd.f32 %v547, %v441
    %v549 = vadd.f32 %v548, %v482
    %v550 = vadd.f32 %v549, %v523
    %551 = vadd.xlane.f32.xlu0 %v550
    %v552 = vpop.xlane.xlu0 %551
    %v553 = vadd.f32 %v321, %v362
    %v554 = vadd.f32 %v553, %v403
    %v555 = vadd.f32 %v554, %v444
    %v556 = vadd.f32 %v555, %v485
    %v557 = vadd.f32 %v556, %v526
    %558 = vadd.xlane.f32.xlu0 %v557
    %v559 = vpop.xlane.xlu0 %558
    %v560 = vadd.f32 %v324, %v365
    %v561 = vadd.f32 %v560, %v406
    %v562 = vadd.f32 %v561, %v447
    %v563 = vadd.f32 %v562, %v488
    %v564 = vadd.f32 %v563, %v529
    %565 = vadd.xlane.f32.xlu0 %v564
    %v566 = vpop.xlane.xlu0 %565
    %v567 = vadd.f32 %v327, %v368
    %v568 = vadd.f32 %v567, %v409
    %v569 = vadd.f32 %v568, %v450
    %v570 = vadd.f32 %v569, %v491
    %v571 = vadd.f32 %v570, %v532
    %572 = vadd.xlane.f32.xlu0 %v571
    %v573 = vpop.xlane.xlu0 %572
    %v574 = vadd.f32 %v330, %v371
    %v575 = vadd.f32 %v574, %v412
    %v576 = vadd.f32 %v575, %v453
    %v577 = vadd.f32 %v576, %v494
    %v578 = vadd.f32 %v577, %v535
    %579 = vadd.xlane.f32.xlu0 %v578
    %v580 = vpop.xlane.xlu0 %579
    %v581 = vadd.f32 %v333, %v374
    %v582 = vadd.f32 %v581, %v415
    %v583 = vadd.f32 %v582, %v456
    %v584 = vadd.f32 %v583, %v497
    %v585 = vadd.f32 %v584, %v538
    %586 = vadd.xlane.f32.xlu0 %v585
    %v587 = vpop.xlane.xlu0 %586
    %v588 = vadd.f32 %v336, %v377
    %v589 = vadd.f32 %v588, %v418
    %v590 = vadd.f32 %v589, %v459
    %v591 = vadd.f32 %v590, %v500
    %v592 = vadd.f32 %v591, %v541
    %593 = vadd.xlane.f32.xlu0 %v592
    %v594 = vpop.xlane.xlu0 %593
    %vm595 = vcmask 1043456
    %v596 = vsel %vm595, %v339, 0.0
    %v597 = vsel %vm595, %v380, 0.0
    %v598 = vadd.f32 %v596, %v597
    %v599 = vsel %vm595, %v421, 0.0
    %v600 = vadd.f32 %v598, %v599
    %v601 = vsel %vm595, %v462, 0.0
    %v602 = vadd.f32 %v600, %v601
    %v603 = vsel %vm595, %v503, 0.0
    %v604 = vadd.f32 %v602, %v603
    %v605 = vsel %vm595, %v544, 0.0
    %v606 = vadd.f32 %v604, %v605
    %607 = vadd.xlane.f32.xlu0 %v606
    %v608 = vpop.xlane.xlu0 %607
    %v609 = vmul.f32 %v318, %v318
    %v610 = vmul.f32 %v359, %v359
    %v611 = vmul.f32 %v400, %v400
    %v612 = vmul.f32 %v441, %v441
    %v613 = vmul.f32 %v482, %v482
    %v614 = vmul.f32 %v523, %v523
    %v615 = vmul.f32 %v321, %v321
    %v616 = vmul.f32 %v362, %v362
    %v617 = vmul.f32 %v403, %v403
    %v618 = vmul.f32 %v444, %v444
    %v619 = vmul.f32 %v485, %v485
    %v620 = vmul.f32 %v526, %v526
    %v621 = vmul.f32 %v324, %v324
    %v622 = vmul.f32 %v365, %v365
    %v623 = vmul.f32 %v406, %v406
    %v624 = vmul.f32 %v447, %v447
    %v625 = vmul.f32 %v488, %v488
    %v626 = vmul.f32 %v529, %v529
    %v627 = vmul.f32 %v327, %v327
    %v628 = vmul.f32 %v368, %v368
    %v629 = vmul.f32 %v409, %v409
    %v630 = vmul.f32 %v450, %v450
    %v631 = vmul.f32 %v491, %v491
    %v632 = vmul.f32 %v532, %v532
    %v633 = vmul.f32 %v330, %v330
    %v634 = vmul.f32 %v371, %v371
    %v635 = vmul.f32 %v412, %v412
    %v636 = vmul.f32 %v453, %v453
    %v637 = vmul.f32 %v494, %v494
    %v638 = vmul.f32 %v535, %v535
    %v639 = vmul.f32 %v333, %v333
    %v640 = vmul.f32 %v374, %v374
    %v641 = vmul.f32 %v415, %v415
    %v642 = vmul.f32 %v456, %v456
    %v643 = vmul.f32 %v497, %v497
    %v644 = vmul.f32 %v538, %v538
    %v645 = vmul.f32 %v336, %v336
    %v646 = vmul.f32 %v377, %v377
    %v647 = vmul.f32 %v418, %v418
    %v648 = vmul.f32 %v459, %v459
    %v649 = vmul.f32 %v500, %v500
    %v650 = vmul.f32 %v541, %v541
    %v651 = vmul.f32 %v339, %v339
    %v652 = vmul.f32 %v380, %v380
    %v653 = vmul.f32 %v421, %v421
    %v654 = vmul.f32 %v462, %v462
    %v655 = vmul.f32 %v503, %v503
    %v656 = vmul.f32 %v544, %v544
    %v657 = vadd.f32 %v609, %v610
    %v658 = vadd.f32 %v657, %v611
    %v659 = vadd.f32 %v658, %v612
    %v660 = vadd.f32 %v659, %v613
    %v661 = vadd.f32 %v660, %v614
    %662 = vadd.xlane.f32.xlu0 %v661
    %v663 = vpop.xlane.xlu0 %662
    %v664 = vadd.f32 %v615, %v616
    %v665 = vadd.f32 %v664, %v617
    %v666 = vadd.f32 %v665, %v618
    %v667 = vadd.f32 %v666, %v619
    %v668 = vadd.f32 %v667, %v620
    %669 = vadd.xlane.f32.xlu0 %v668
    %v670 = vpop.xlane.xlu0 %669
    %v671 = vadd.f32 %v621, %v622
    %v672 = vadd.f32 %v671, %v623
    %v673 = vadd.f32 %v672, %v624
    %v674 = vadd.f32 %v673, %v625
    %v675 = vadd.f32 %v674, %v626
    %676 = vadd.xlane.f32.xlu0 %v675
    %v677 = vpop.xlane.xlu0 %676
    %v678 = vadd.f32 %v627, %v628
    %v679 = vadd.f32 %v678, %v629
    %v680 = vadd.f32 %v679, %v630
    %v681 = vadd.f32 %v680, %v631
    %v682 = vadd.f32 %v681, %v632
    %683 = vadd.xlane.f32.xlu0 %v682
    %v684 = vpop.xlane.xlu0 %683
    %v685 = vadd.f32 %v633, %v634
    %v686 = vadd.f32 %v685, %v635
    %v687 = vadd.f32 %v686, %v636
    %v688 = vadd.f32 %v687, %v637
    %v689 = vadd.f32 %v688, %v638
    %690 = vadd.xlane.f32.xlu0 %v689
    %v691 = vpop.xlane.xlu0 %690
    %v692 = vadd.f32 %v639, %v640
    %v693 = vadd.f32 %v692, %v641
    %v694 = vadd.f32 %v693, %v642
    %v695 = vadd.f32 %v694, %v643
    %v696 = vadd.f32 %v695, %v644
    %697 = vadd.xlane.f32.xlu0 %v696
    %v698 = vpop.xlane.xlu0 %697
    %v699 = vadd.f32 %v645, %v646
    %v700 = vadd.f32 %v699, %v647
    %v701 = vadd.f32 %v700, %v648
    %v702 = vadd.f32 %v701, %v649
    %v703 = vadd.f32 %v702, %v650
    %704 = vadd.xlane.f32.xlu0 %v703
    %v705 = vpop.xlane.xlu0 %704
    %v706 = vsel %vm595, %v651, 0.0
    %v707 = vsel %vm595, %v652, 0.0
    %v708 = vadd.f32 %v706, %v707
    %v709 = vsel %vm595, %v653, 0.0
    %v710 = vadd.f32 %v708, %v709
    %v711 = vsel %vm595, %v654, 0.0
    %v712 = vadd.f32 %v710, %v711
    %v713 = vsel %vm595, %v655, 0.0
    %v714 = vadd.f32 %v712, %v713
    %v715 = vsel %vm595, %v656, 0.0
    %v716 = vadd.f32 %v714, %v715
    %717 = vadd.xlane.f32.xlu0 %v716
    %v718 = vpop.xlane.xlu0 %717
    %v719 = vmul.f32 %v552, 0.0013020834
    %v720 = vmul.f32 %v559, 0.0013020834
    %v721 = vmul.f32 %v566, 0.0013020834
    %v722 = vmul.f32 %v573, 0.0013020834
    %v723 = vmul.f32 %v580, 0.0013020834
    %v724 = vmul.f32 %v587, 0.0013020834
    %v725 = vmul.f32 %v594, 0.0013020834
    %v726 = vmul.f32 %v608, 0.0013020834
    %v727 = vmul.f32 %v663, 0.0013020834
    %v728 = vmul.f32 %v670, 0.0013020834
    %v729 = vmul.f32 %v677, 0.0013020834
    %v730 = vmul.f32 %v684, 0.0013020834
    %v731 = vmul.f32 %v691, 0.0013020834
    %v732 = vmul.f32 %v698, 0.0013020834
    %v733 = vmul.f32 %v705, 0.0013020834
    %v734 = vmul.f32 %v718, 0.0013020834
    %v735 = vmul.f32 %v719, %v719
    %v736 = vmul.f32 %v720, %v720
    %v737 = vmul.f32 %v721, %v721
    %v738 = vmul.f32 %v722, %v722
    %v739 = vmul.f32 %v723, %v723
    %v740 = vmul.f32 %v724, %v724
    %v741 = vmul.f32 %v725, %v725
    %v742 = vmul.f32 %v726, %v726
    %v743 = vsub.f32 %v727, %v735
    %v744 = vsub.f32 %v728, %v736
    %v745 = vsub.f32 %v729, %v737
    %v746 = vsub.f32 %v730, %v738
    %v747 = vsub.f32 %v731, %v739
    %v748 = vsub.f32 %v732, %v740
    %v749 = vsub.f32 %v733, %v741
    %v750 = vsub.f32 %v734, %v742
    %v751 = vmax.f32 %v743, 0.0
    %v752 = vmax.f32 %v744, 0.0
    %v753 = vmax.f32 %v745, 0.0
    %v754 = vmax.f32 %v746, 0.0
    %v755 = vmax.f32 %v747, 0.0
    %v756 = vmax.f32 %v748, 0.0
    %v757 = vmax.f32 %v749, 0.0
    %v758 = vmax.f32 %v750, 0.0
    %v759 = vadd.f32 %v751, 1e-05
    %v760 = vadd.f32 %v752, 1e-05
    %v761 = vadd.f32 %v753, 1e-05
    %v762 = vadd.f32 %v754, 1e-05
    %v763 = vadd.f32 %v755, 1e-05
    %v764 = vadd.f32 %v756, 1e-05
    %v765 = vadd.f32 %v757, 1e-05
    %v766 = vadd.f32 %v758, 1e-05
    %v767 = vrsqrt.pop %v759
    %v768 = vmul.f32 %v767, %v759
    %v769 = vmul.f32 %v768, %v767
    %v770 = vmul.f32 0.5, %v769
    %v771 = vsub.f32 1.5, %v770
    %v772 = vmul.f32 %v767, %v771
    %vm773 = vweird.f32 %v759
    %vm774 = vweird.f32 %v767
    %vm775 = vmor %vm773, %vm774
    %v776 = vsel %vm775, %v767, %v772
    %v777 = vrsqrt.pop %v760
    %v778 = vmul.f32 %v777, %v760
    %v779 = vmul.f32 %v778, %v777
    %v780 = vmul.f32 0.5, %v779
    %v781 = vsub.f32 1.5, %v780
    %v782 = vmul.f32 %v777, %v781
    %vm783 = vweird.f32 %v760
    %vm784 = vweird.f32 %v777
    %vm785 = vmor %vm783, %vm784
    %v786 = vsel %vm785, %v777, %v782
    %v787 = vrsqrt.pop %v761
    %v788 = vmul.f32 %v787, %v761
    %v789 = vmul.f32 %v788, %v787
    %v790 = vmul.f32 0.5, %v789
    %v791 = vsub.f32 1.5, %v790
    %v792 = vmul.f32 %v787, %v791
    %vm793 = vweird.f32 %v761
    %vm794 = vweird.f32 %v787
    %vm795 = vmor %vm793, %vm794
    %v796 = vsel %vm795, %v787, %v792
    %v797 = vrsqrt.pop %v762
    %v798 = vmul.f32 %v797, %v762
    %v799 = vmul.f32 %v798, %v797
    %v800 = vmul.f32 0.5, %v799
    %v801 = vsub.f32 1.5, %v800
    %v802 = vmul.f32 %v797, %v801
    %vm803 = vweird.f32 %v762
    %vm804 = vweird.f32 %v797
    %vm805 = vmor %vm803, %vm804
    %v806 = vsel %vm805, %v797, %v802
    %v807 = vrsqrt.pop %v763
    %v808 = vmul.f32 %v807, %v763
    %v809 = vmul.f32 %v808, %v807
    %v810 = vmul.f32 0.5, %v809
    %v811 = vsub.f32 1.5, %v810
    %v812 = vmul.f32 %v807, %v811
    %vm813 = vweird.f32 %v763
    %vm814 = vweird.f32 %v807
    %vm815 = vmor %vm813, %vm814
    %v816 = vsel %vm815, %v807, %v812
    %v817 = vrsqrt.pop %v764
    %v818 = vmul.f32 %v817, %v764
    %v819 = vmul.f32 %v818, %v817
    %v820 = vmul.f32 0.5, %v819
    %v821 = vsub.f32 1.5, %v820
    %v822 = vmul.f32 %v817, %v821
    %vm823 = vweird.f32 %v764
    %vm824 = vweird.f32 %v817
    %vm825 = vmor %vm823, %vm824
    %v826 = vsel %vm825, %v817, %v822
    %v827 = vrsqrt.pop %v765
    %v828 = vmul.f32 %v827, %v765
    %v829 = vmul.f32 %v828, %v827
    %v830 = vmul.f32 0.5, %v829
    %v831 = vsub.f32 1.5, %v830
    %v832 = vmul.f32 %v827, %v831
    %vm833 = vweird.f32 %v765
    %vm834 = vweird.f32 %v827
    %vm835 = vmor %vm833, %vm834
    %v836 = vsel %vm835, %v827, %v832
    %v837 = vrsqrt.pop %v766
    %v838 = vmul.f32 %v837, %v766
    %v839 = vmul.f32 %v838, %v837
    %v840 = vmul.f32 0.5, %v839
    %v841 = vsub.f32 1.5, %v840
    %v842 = vmul.f32 %v837, %v841
    %vm843 = vweird.f32 %v766
    %vm844 = vweird.f32 %v837
    %vm845 = vmor %vm843, %vm844
    %v846 = vsel %vm845, %v837, %v842
    %v847 = vsub.f32 %v318, %v719
    %v848 = vsub.f32 %v359, %v719
    %v849 = vsub.f32 %v400, %v719
    %v850 = vsub.f32 %v441, %v719
    %v851 = vsub.f32 %v482, %v719
    %v852 = vsub.f32 %v523, %v719
    %v853 = vsub.f32 %v321, %v720
    %v854 = vsub.f32 %v362, %v720
    %v855 = vsub.f32 %v403, %v720
    %v856 = vsub.f32 %v444, %v720
    %v857 = vsub.f32 %v485, %v720
    %v858 = vsub.f32 %v526, %v720
    %v859 = vsub.f32 %v324, %v721
    %v860 = vsub.f32 %v365, %v721
    %v861 = vsub.f32 %v406, %v721
    %v862 = vsub.f32 %v447, %v721
    %v863 = vsub.f32 %v488, %v721
    %v864 = vsub.f32 %v529, %v721
    %v865 = vsub.f32 %v327, %v722
    %v866 = vsub.f32 %v368, %v722
    %v867 = vsub.f32 %v409, %v722
    %v868 = vsub.f32 %v450, %v722
    %v869 = vsub.f32 %v491, %v722
    %v870 = vsub.f32 %v532, %v722
    %v871 = vsub.f32 %v330, %v723
    %v872 = vsub.f32 %v371, %v723
    %v873 = vsub.f32 %v412, %v723
    %v874 = vsub.f32 %v453, %v723
    %v875 = vsub.f32 %v494, %v723
    %v876 = vsub.f32 %v535, %v723
    %v877 = vsub.f32 %v333, %v724
    %v878 = vsub.f32 %v374, %v724
    %v879 = vsub.f32 %v415, %v724
    %v880 = vsub.f32 %v456, %v724
    %v881 = vsub.f32 %v497, %v724
    %v882 = vsub.f32 %v538, %v724
    %v883 = vsub.f32 %v336, %v725
    %v884 = vsub.f32 %v377, %v725
    %v885 = vsub.f32 %v418, %v725
    %v886 = vsub.f32 %v459, %v725
    %v887 = vsub.f32 %v500, %v725
    %v888 = vsub.f32 %v541, %v725
    %v889 = vsub.f32 %v339, %v726
    %v890 = vsub.f32 %v380, %v726
    %v891 = vsub.f32 %v421, %v726
    %v892 = vsub.f32 %v462, %v726
    %v893 = vsub.f32 %v503, %v726
    %v894 = vsub.f32 %v544, %v726
    %v895 = vmul.f32 %v847, %v776
    %v896 = vmul.f32 %v848, %v776
    %v897 = vmul.f32 %v849, %v776
    %v898 = vmul.f32 %v850, %v776
    %v899 = vmul.f32 %v851, %v776
    %v900 = vmul.f32 %v852, %v776
    %v901 = vmul.f32 %v853, %v786
    %v902 = vmul.f32 %v854, %v786
    %v903 = vmul.f32 %v855, %v786
    %v904 = vmul.f32 %v856, %v786
    %v905 = vmul.f32 %v857, %v786
    %v906 = vmul.f32 %v858, %v786
    %v907 = vmul.f32 %v859, %v796
    %v908 = vmul.f32 %v860, %v796
    %v909 = vmul.f32 %v861, %v796
    %v910 = vmul.f32 %v862, %v796
    %v911 = vmul.f32 %v863, %v796
    %v912 = vmul.f32 %v864, %v796
    %v913 = vmul.f32 %v865, %v806
    %v914 = vmul.f32 %v866, %v806
    %v915 = vmul.f32 %v867, %v806
    %v916 = vmul.f32 %v868, %v806
    %v917 = vmul.f32 %v869, %v806
    %v918 = vmul.f32 %v870, %v806
    %v919 = vmul.f32 %v871, %v816
    %v920 = vmul.f32 %v872, %v816
    %v921 = vmul.f32 %v873, %v816
    %v922 = vmul.f32 %v874, %v816
    %v923 = vmul.f32 %v875, %v816
    %v924 = vmul.f32 %v876, %v816
    %v925 = vmul.f32 %v877, %v826
    %v926 = vmul.f32 %v878, %v826
    %v927 = vmul.f32 %v879, %v826
    %v928 = vmul.f32 %v880, %v826
    %v929 = vmul.f32 %v881, %v826
    %v930 = vmul.f32 %v882, %v826
    %v931 = vmul.f32 %v883, %v836
    %v932 = vmul.f32 %v884, %v836
    %v933 = vmul.f32 %v885, %v836
    %v934 = vmul.f32 %v886, %v836
    %v935 = vmul.f32 %v887, %v836
    %v936 = vmul.f32 %v888, %v836
    %v937 = vmul.f32 %v889, %v846
    %v938 = vmul.f32 %v890, %v846
    %v939 = vmul.f32 %v891, %v846
    %v940 = vmul.f32 %v892, %v846
    %v941 = vmul.f32 %v893, %v846
    %v942 = vmul.f32 %v894, %v846
    %v943 = vld [vmem:[%s2] sm:$0x3f]
    %v945 = vperm.slane %v943, 0
    %v946 = vperm.slane %v943, 1
    %v947 = vperm.slane %v943, 2
    %v948 = vperm.slane %v943, 3
    %v949 = vperm.slane %v943, 4
    %v950 = vperm.slane %v943, 5
    %v957 = vmul.f32 %v895, %v945
    %v958 = vmul.f32 %v896, %v946
    %v959 = vmul.f32 %v897, %v947
    %v960 = vmul.f32 %v898, %v948
    %v961 = vmul.f32 %v899, %v949
    %v962 = vmul.f32 %v900, %v950
    %v963 = vmul.f32 %v901, %v945
    %v964 = vmul.f32 %v902, %v946
    %v965 = vmul.f32 %v903, %v947
    %v966 = vmul.f32 %v904, %v948
    %v967 = vmul.f32 %v905, %v949
    %v968 = vmul.f32 %v906, %v950
    %v969 = vmul.f32 %v907, %v945
    %v970 = vmul.f32 %v908, %v946
    %v971 = vmul.f32 %v909, %v947
    %v972 = vmul.f32 %v910, %v948
    %v973 = vmul.f32 %v911, %v949
    %v974 = vmul.f32 %v912, %v950
    %v975 = vmul.f32 %v913, %v945
    %v976 = vmul.f32 %v914, %v946
    %v977 = vmul.f32 %v915, %v947
    %v978 = vmul.f32 %v916, %v948
    %v979 = vmul.f32 %v917, %v949
    %v980 = vmul.f32 %v918, %v950
    %v981 = vmul.f32 %v919, %v945
    %v982 = vmul.f32 %v920, %v946
    %v983 = vmul.f32 %v921, %v947
    %v984 = vmul.f32 %v922, %v948
    %v985 = vmul.f32 %v923, %v949
    %v986 = vmul.f32 %v924, %v950
    %v987 = vmul.f32 %v925, %v945
    %v988 = vmul.f32 %v926, %v946
    %v989 = vmul.f32 %v927, %v947
    %v990 = vmul.f32 %v928, %v948
    %v991 = vmul.f32 %v929, %v949
    %v992 = vmul.f32 %v930, %v950
    %v993 = vmul.f32 %v931, %v945
    %v994 = vmul.f32 %v932, %v946
    %v995 = vmul.f32 %v933, %v947
    %v996 = vmul.f32 %v934, %v948
    %v997 = vmul.f32 %v935, %v949
    %v998 = vmul.f32 %v936, %v950
    %v999 = vmul.f32 %v937, %v945
    %v1000 = vmul.f32 %v938, %v946
    %v1001 = vmul.f32 %v939, %v947
    %v1002 = vmul.f32 %v940, %v948
    %v1003 = vmul.f32 %v941, %v949
    %v1004 = vmul.f32 %v942, %v950
    %v1005 = vld [vmem:[%s3] sm:$0x3f]
    %v1007 = vperm.slane %v1005, 0
    %v1008 = vperm.slane %v1005, 1
    %v1009 = vperm.slane %v1005, 2
    %v1010 = vperm.slane %v1005, 3
    %v1011 = vperm.slane %v1005, 4
    %v1012 = vperm.slane %v1005, 5
    %v1019 = vadd.f32 %v957, %v1007
    %v1020 = vadd.f32 %v958, %v1008
    %v1021 = vadd.f32 %v959, %v1009
    %v1022 = vadd.f32 %v960, %v1010
    %v1023 = vadd.f32 %v961, %v1011
    %v1024 = vadd.f32 %v962, %v1012
    %v1025 = vadd.f32 %v963, %v1007
    %v1026 = vadd.f32 %v964, %v1008
    %v1027 = vadd.f32 %v965, %v1009
    %v1028 = vadd.f32 %v966, %v1010
    %v1029 = vadd.f32 %v967, %v1011
    %v1030 = vadd.f32 %v968, %v1012
    %v1031 = vadd.f32 %v969, %v1007
    %v1032 = vadd.f32 %v970, %v1008
    %v1033 = vadd.f32 %v971, %v1009
    %v1034 = vadd.f32 %v972, %v1010
    %v1035 = vadd.f32 %v973, %v1011
    %v1036 = vadd.f32 %v974, %v1012
    %v1037 = vadd.f32 %v975, %v1007
    %v1038 = vadd.f32 %v976, %v1008
    %v1039 = vadd.f32 %v977, %v1009
    %v1040 = vadd.f32 %v978, %v1010
    %v1041 = vadd.f32 %v979, %v1011
    %v1042 = vadd.f32 %v980, %v1012
    %v1043 = vadd.f32 %v981, %v1007
    %v1044 = vadd.f32 %v982, %v1008
    %v1045 = vadd.f32 %v983, %v1009
    %v1046 = vadd.f32 %v984, %v1010
    %v1047 = vadd.f32 %v985, %v1011
    %v1048 = vadd.f32 %v986, %v1012
    %v1049 = vadd.f32 %v987, %v1007
    %v1050 = vadd.f32 %v988, %v1008
    %v1051 = vadd.f32 %v989, %v1009
    %v1052 = vadd.f32 %v990, %v1010
    %v1053 = vadd.f32 %v991, %v1011
    %v1054 = vadd.f32 %v992, %v1012
    %v1055 = vadd.f32 %v993, %v1007
    %v1056 = vadd.f32 %v994, %v1008
    %v1057 = vadd.f32 %v995, %v1009
    %v1058 = vadd.f32 %v996, %v1010
    %v1059 = vadd.f32 %v997, %v1011
    %v1060 = vadd.f32 %v998, %v1012
    %v1061 = vadd.f32 %v999, %v1007
    %v1062 = vadd.f32 %v1000, %v1008
    %v1063 = vadd.f32 %v1001, %v1009
    %v1064 = vadd.f32 %v1002, %v1010
    %v1065 = vadd.f32 %v1003, %v1011
    %v1066 = vadd.f32 %v1004, %v1012
    %1067 = vst [vmem:[#allocation5] sm:$0xff] %v1019
    %1068 = vst [vmem:[#allocation5 + $0x8] sm:$0xff] %v1020
    %1069 = vst [vmem:[#allocation5 + $0x10] sm:$0xff] %v1021
    %1070 = vst [vmem:[#allocation5 + $0x18] sm:$0xff] %v1022
    %1071 = vst [vmem:[#allocation5 + $0x20] sm:$0xff] %v1023
    %1072 = vst [vmem:[#allocation5 + $0x28] sm:$0xff] %v1024
    %1073 = vst [vmem:[#allocation5 + $0x30] sm:$0xff] %v1025
    %1074 = vst [vmem:[#allocation5 + $0x38] sm:$0xff] %v1026
    %1075 = vst [vmem:[#allocation5 + $0x40] sm:$0xff] %v1027
    %1076 = vst [vmem:[#allocation5 + $0x48] sm:$0xff] %v1028
    %1077 = vst [vmem:[#allocation5 + $0x50] sm:$0xff] %v1029
    %1078 = vst [vmem:[#allocation5 + $0x58] sm:$0xff] %v1030
    %1079 = vst [vmem:[#allocation5 + $0x60] sm:$0xff] %v1031
    %1080 = vst [vmem:[#allocation5 + $0x68] sm:$0xff] %v1032
    %1081 = vst [vmem:[#allocation5 + $0x70] sm:$0xff] %v1033
    %1082 = vst [vmem:[#allocation5 + $0x78] sm:$0xff] %v1034
    %1083 = vst [vmem:[#allocation5 + $0x80] sm:$0xff] %v1035
    %1084 = vst [vmem:[#allocation5 + $0x88] sm:$0xff] %v1036
    %1085 = vst [vmem:[#allocation5 + $0x90] sm:$0xff] %v1037
    %1086 = vst [vmem:[#allocation5 + $0x98] sm:$0xff] %v1038
    %1087 = vst [vmem:[#allocation5 + $0xa0] sm:$0xff] %v1039
    %1088 = vst [vmem:[#allocation5 + $0xa8] sm:$0xff] %v1040
    %1089 = vst [vmem:[#allocation5 + $0xb0] sm:$0xff] %v1041
    %1090 = vst [vmem:[#allocation5 + $0xb8] sm:$0xff] %v1042
    %1091 = vst [vmem:[#allocation5 + $0xc0] sm:$0xff] %v1043
    %1092 = vst [vmem:[#allocation5 + $0xc8] sm:$0xff] %v1044
    %1093 = vst [vmem:[#allocation5 + $0xd0] sm:$0xff] %v1045
    %1094 = vst [vmem:[#allocation5 + $0xd8] sm:$0xff] %v1046
    %1095 = vst [vmem:[#allocation5 + $0xe0] sm:$0xff] %v1047
    %1096 = vst [vmem:[#allocation5 + $0xe8] sm:$0xff] %v1048
    %1097 = vst [vmem:[#allocation5 + $0xf0] sm:$0xff] %v1049
    %1098 = vst [vmem:[#allocation5 + $0xf8] sm:$0xff] %v1050
    %1099 = vst [vmem:[#allocation5 + $0x100] sm:$0xff] %v1051
    %1100 = vst [vmem:[#allocation5 + $0x108] sm:$0xff] %v1052
    %1101 = vst [vmem:[#allocation5 + $0x110] sm:$0xff] %v1053
    %1102 = vst [vmem:[#allocation5 + $0x118] sm:$0xff] %v1054
    %1103 = vst [vmem:[#allocation5 + $0x120] sm:$0xff] %v1055
    %1104 = vst [vmem:[#allocation5 + $0x128] sm:$0xff] %v1056
    %1105 = vst [vmem:[#allocation5 + $0x130] sm:$0xff] %v1057
    %1106 = vst [vmem:[#allocation5 + $0x138] sm:$0xff] %v1058
    %1107 = vst [vmem:[#allocation5 + $0x140] sm:$0xff] %v1059
    %1108 = vst [vmem:[#allocation5 + $0x148] sm:$0xff] %v1060
    %1109 = vst [vmem:[#allocation5 + $0x150] sm:$0xf] %v1061
    %1110 = vst [vmem:[#allocation5 + $0x158] sm:$0xf] %v1062
    %1111 = vst [vmem:[#allocation5 + $0x160] sm:$0xf] %v1063
    %1112 = vst [vmem:[#allocation5 + $0x168] sm:$0xf] %v1064
    %1113 = vst [vmem:[#allocation5 + $0x170] sm:$0xf] %v1065
    %1114 = vst [vmem:[#allocation5 + $0x178] sm:$0xf] %v1066
    // Predicated region
    $region22: #{tpu_custom_call.1} parent=1 // pred_check
      _
    $region23: #{tpu_custom_call.1} parent=1 // pred_check_branch
      %1116 = sbr.rel (0) target = $region25
    $region24: #{tpu_custom_call.1} parent=1 // pred_region
      %1118 = vsyncadd [#allocation4], 0
      %s1119 = sshll.u32 [#allocation5], 4
      %s1120 = int_to_ptr.vmem [resolvable:$true] %s1119
      %s1121 = sshll.u32 %s4, 4
      %s1122 = int_to_ptr.hbm [resolvable:$true] %s1121
      %1127 = dma.vmem_to_hbm [thread:$0]  %s1120, 6144, %s1122, [#allocation4], 768, 768, 48
    $region25: #{tpu_custom_call.1} parent=1 // pred_fallthru
      _
    // Predicated region
    $region26: #{tpu_custom_call.1} parent=1 // pred_check
      _
    $region27: #{tpu_custom_call.1} parent=1 // pred_check_branch
      %1129 = sbr.rel (0) target = $region29
    $region28: #{tpu_custom_call.1} parent=1 // pred_region
      %1131 = dma.done [#allocation4], 6144
    $region29: #{tpu_custom_call.1} parent=1 // pred_fallthru
      _
    %1132 = vsyncpa [#allocation3], 1
    %1133 = vsyncpa [#allocation4], 1

</llo_original>
